<compile_context>
chip_gen: v6e
topology: v6e:2x2x1
jax: 0.10.0
libtpu: 0.0.40
codegen_flags: <defaults>
</compile_context>

<pallas_src>
import math

import jax
import jax.numpy as jnp
from jax.experimental import pallas as pl
from jax.experimental.pallas import tpu as pltpu


# ---------------------------------------------------------------------------
# Diffusion schedule (plain JAX glue, mirrors cosine_beta_schedule + buffers)
# ---------------------------------------------------------------------------
def cosine_beta_schedule(timesteps, s=0.004):
    steps = timesteps + 1
    x = jnp.linspace(0.0, float(timesteps), steps, dtype=jnp.float32)
    alphas_cumprod = jnp.cos((x / timesteps + s) / (1 + s) * jnp.pi * 0.5) ** 2
    alphas_cumprod = alphas_cumprod / alphas_cumprod[0]
    betas = 1.0 - alphas_cumprod[1:] / alphas_cumprod[:-1]
    return jnp.clip(betas, 0.0, 0.999)


def make_diffusion_buffers(n_steps):
    betas = cosine_beta_schedule(n_steps)
    alphas = 1.0 - betas
    alphas_cumprod = jnp.cumprod(alphas)
    sqrt_alphas_cumprod = jnp.sqrt(alphas_cumprod)
    sqrt_one_minus_alphas_cumprod = jnp.sqrt(1.0 - alphas_cumprod)
    loss_weight = jnp.sqrt(alphas) * jnp.sqrt(1.0 - alphas_cumprod) / betas / 100.0
    return sqrt_alphas_cumprod, sqrt_one_minus_alphas_cumprod, loss_weight


def make_fourier_operator(seq_len, ff_weight):
    """Stacked real DFT for torch.fft.fft(..., norm='forward') over the seq axis
    (rows 0..S-1 = real, rows S..2S-1 = imag, both scaled by 1/S), pre-scaled by
    sqrt(ff_weight).  ff_weight is a module-init config constant (like the
    registered schedule buffers), so baking it in preserves forward semantics."""
    k = jnp.arange(seq_len, dtype=jnp.float32)[:, None]
    n = jnp.arange(seq_len, dtype=jnp.float32)[None, :]
    ang = 2.0 * jnp.pi * k * n / seq_len
    dft = jnp.concatenate([jnp.cos(ang), -jnp.sin(ang)], axis=0) / seq_len  # (2S, S)
    return dft * jnp.sqrt(jnp.float32(ff_weight))


# ---------------------------------------------------------------------------
# Pallas kernel: fully fused diffusion training-step loss (single invocation)
# ---------------------------------------------------------------------------
def _diffusion_ts_loss_kernel(scal_ref, x_ref, noise_ref, emb_ref, w_ref, dft_ref,
                              out_ref):
    """q_sample -> fc(cat(x_noisy, emb)) -> L2 recon loss + Fourier loss
    (one stacked [Re; Im] DFT matmul over the sequence axis, norm='forward')
    -> loss_weight[t] weighting -> global mean, reduced to one scalar.

    Identity:  total = (1/(B*S*D)) * sum_b lw_b * ( sum diff_b^2
                                                    + ffw * sum |DFT(diff_b)|^2 )
    computed as sum(sdiff^2) + sum((sqrt(ffw)*DFT @ sdiff)^2) with
    sdiff = sqrt(lw_b) * diff   (DFT linearity; lw, ffw >= 0)."""
    B, S, D = x_ref.shape
    E = emb_ref.shape[1]

    a = scal_ref[0]                        # (B, 1, 1)  sqrt_alphas_cumprod[t]
    bcoef = scal_ref[1]                    # (B, 1, 1)  sqrt_one_minus_alphas_cumprod[t]
    sqrt_lw = jnp.sqrt(scal_ref[2])        # (B, 1, 1)  sqrt(loss_weight[t])

    x3 = x_ref[...]                                             # (B, S, D)
    x_noisy = a * x3 + bcoef * noise_ref[...]                   # q_sample

    w = w_ref[...]                                              # (D+E+1, D)
    w_x = w[:D]                                                 # (D, D)
    w_e = w[D:D + E]                                            # (E, D)
    bias = w[D + E:]                                            # (1, D)

    # fc Linear over the concat(x_noisy, emb) input, split into two matmuls.
    # Batch folded into the MXU M-dim for the x_noisy half; the emb half is a
    # tiny (B, E) @ (E, D) push (kept in-kernel to avoid a separate XLA dispatch).
    # TODO(synk): Transformer(trend, season) not provided; identity surrogate.
    recon2 = jnp.dot(x_noisy.reshape(B * S, D), w_x,
                     preferred_element_type=jnp.float32)        # (B*S, D)
    embp = jnp.dot(emb_ref[...], w_e,
                   preferred_element_type=jnp.float32) + bias   # (B, D)

    diff3 = recon2.reshape(B, S, D) + embp[:, None, :] - x3     # (B, S, D)
    sdiff3 = sqrt_lw * diff3                                    # sqrt(lw) pre-scale

    sdiff2 = sdiff3.reshape(B * S, D)                           # leading-dim merge
    rec_sum = jnp.sum(sdiff2 * sdiff2, keepdims=True)           # (1, 1)

    # Batched DFT over the sequence axis: put the B (S, D) slabs side by side on
    # the lane axis (lane dim D unchanged per slab) and do ONE MXU push.
    # dft_ref already carries the 1/S (norm='forward') and sqrt(ff_weight) scales.
    sdiff_sbd = jnp.concatenate([sdiff3[i] for i in range(B)], axis=1)  # (S, B*D)
    fd = jnp.dot(dft_ref[...], sdiff_sbd,
                 preferred_element_type=jnp.float32)            # (2S, B*D)
    fl_sum = jnp.sum(fd * fd, keepdims=True)                    # (1, 1)

    # rec_loss = (elementwise_loss * lw).mean()  ==  (rec_sum + fl_sum) / (B*S*D)
    out_ref[...] = (rec_sum + fl_sum) * (1.0 / float(B * S * D))


def diffusion_ts_loss(x, noise, emb, sqrt_ac_t, sqrt_1mac_t, lw_t,
                      w_packed, dft_scaled):
    B, S, D = x.shape
    # Per-batch diffusion scalars packed into ONE small operand (fewer DMAs).
    scal = jnp.stack([sqrt_ac_t, sqrt_1mac_t, lw_t]).astype(jnp.float32)
    scal = scal.reshape(3, B, 1, 1)

    vmem = pl.BlockSpec(memory_space=pltpu.MemorySpace.VMEM)

    loss = pl.pallas_call(
        _diffusion_ts_loss_kernel,
        out_shape=jax.ShapeDtypeStruct((1, 1), jnp.float32),
        in_specs=[vmem,                 # packed per-batch scalars (3, B, 1, 1)
                  vmem, vmem,           # x, noise
                  vmem,                 # context embedding (B, E)
                  vmem,                 # packed fc weights+bias (D+E+1, D)
                  vmem],                # sqrt(ffw)-scaled stacked DFT (2S, S)
        out_specs=vmem,
    )(scal,
      x.astype(jnp.float32), noise.astype(jnp.float32),
      emb.astype(jnp.float32),
      w_packed.astype(jnp.float32), dft_scaled.astype(jnp.float32))
    return loss[0, 0]


# ---------------------------------------------------------------------------
# Pure-JAX reference (mirrors the PyTorch forward with the same surrogates)
# ---------------------------------------------------------------------------
def reference_loss(x, noise, emb, sqrt_ac_t, sqrt_1mac_t, lw_t, fc_w, fc_b, ff_weight):
    B, S, D = x.shape
    E = emb.shape[-1]
    x_noisy = sqrt_ac_t[:, None, None] * x + sqrt_1mac_t[:, None, None] * noise
    c = jnp.concatenate(
        [x_noisy, jnp.broadcast_to(emb[:, None, :], (B, S, E))], axis=-1)
    x_recon = c @ fc_w + fc_b                                   # identity-Transformer surrogate
    rec = (x_recon - x) ** 2
    fp = jnp.fft.fft(jnp.swapaxes(x_recon, 1, 2), norm="forward")
    ft = jnp.fft.fft(jnp.swapaxes(x, 1, 2), norm="forward")
    fp = jnp.swapaxes(fp, 1, 2)
    ft = jnp.swapaxes(ft, 1, 2)
    fl = (fp.real - ft.real) ** 2 + (fp.imag - ft.imag) ** 2
    rec = rec + ff_weight * fl
    rec = rec.reshape(B, -1)                                    # 'b ... -> b (...)'
    return (rec * lw_t[:, None]).mean()


# ---------------------------------------------------------------------------
# Driver
# ---------------------------------------------------------------------------
if __name__ == "__main__":
    # Small config consistent with the module's forward
    B = 2            # batch
    S = 16           # cfg.dataset.seq_len
    D = 8            # cfg.dataset.time_series_dims
    E = 8            # cfg.model.cond_emb_dim
    N_STEPS = 100    # cfg.model.n_steps
    CTX_CATS = {"var_a": 5, "var_b": 3}   # cfg.dataset.context_vars
    ff_weight = math.sqrt(S) / 5.0        # default reg_weight

    key = jax.random.PRNGKey(0)
    (k_x, k_t, k_noise, k_fcw, k_fcb,
     k_ctx_a, k_ctx_b, k_emb_a, k_emb_b, k_head_a, k_head_b) = jax.random.split(key, 11)

    # Inputs
    x = jax.random.normal(k_x, (B, S, D), dtype=jnp.float32)
    context_vars = {
        "var_a": jax.random.randint(k_ctx_a, (B,), 0, CTX_CATS["var_a"]),
        "var_b": jax.random.randint(k_ctx_b, (B,), 0, CTX_CATS["var_b"]),
    }

    # Diffusion buffers + random timestep / noise (forward steps 1 & 2)
    sqrt_ac, sqrt_1mac, loss_weight = make_diffusion_buffers(N_STEPS)
    t = jax.random.randint(k_t, (B,), 0, N_STEPS)
    noise = jax.random.normal(k_noise, (B, S, D), dtype=jnp.float32)
    sqrt_ac_t = sqrt_ac[t]
    sqrt_1mac_t = sqrt_1mac[t]
    lw_t = loss_weight[t]

    # TODO(synk): ContextModule definition not provided in the module source;
    #             deterministic embedding-sum + per-variable linear-head surrogate.
    emb_tables = {
        "var_a": 0.1 * jax.random.normal(k_emb_a, (CTX_CATS["var_a"], E), jnp.float32),
        "var_b": 0.1 * jax.random.normal(k_emb_b, (CTX_CATS["var_b"], E), jnp.float32),
    }
    heads = {
        "var_a": 0.1 * jax.random.normal(k_head_a, (E, CTX_CATS["var_a"]), jnp.float32),
        "var_b": 0.1 * jax.random.normal(k_head_b, (E, CTX_CATS["var_b"]), jnp.float32),
    }
    embedding = jnp.zeros((B, E), jnp.float32)
    cond_classification_logits = {}
    for name in CTX_CATS:
        e = emb_tables[name][context_vars[name]]
        embedding = embedding + e
        cond_classification_logits[name] = e @ heads[name]

    # fc: Linear(D + E -> D), deterministic synthetic init (stored transposed:
    # (in, out) so y = x @ fc_w + fc_b).
    fc_w = 0.1 * jax.random.normal(k_fcw, (D + E, D), dtype=jnp.float32)
    fc_b = 0.1 * jax.random.normal(k_fcb, (D,), dtype=jnp.float32)

    # Module-init-time constants: packed fc weights+bias, sqrt(ffw)-scaled DFT.
    w_packed = jnp.concatenate([fc_w, fc_b.reshape(1, D)], axis=0)  # (D+E+1, D)
    dft_scaled = make_fourier_operator(S, ff_weight)                # (2S, S)

    loss_fn = jax.jit(diffusion_ts_loss)
    rec_loss = loss_fn(x, noise, embedding, sqrt_ac_t, sqrt_1mac_t, lw_t,
                       w_packed, dft_scaled)
    rec_loss = jax.block_until_ready(rec_loss)
    for v in cond_classification_logits.values():
        jax.block_until_ready(v)

    # Validate the fused kernel against the straightforward JAX forward.
    ref = reference_loss(x, noise, embedding, sqrt_ac_t, sqrt_1mac_t, lw_t,
                         fc_w, fc_b, ff_weight)
    ref = jax.block_until_ready(ref)

    assert rec_loss.shape == () and jnp.isfinite(rec_loss)
    assert jnp.allclose(rec_loss, ref, rtol=5e-3, atol=1e-5), (rec_loss, ref)
    print("KERNEL_OK")
</pallas_src>

<mosaic_0001>
module attributes {stable_mosaic.version = 11 : i64} {
  func.func @_diffusion_ts_loss_kernel(%arg0: memref<3x2x1x1xf32, #tpu.memory_space<vmem>>, %arg1: memref<2x16x8xf32, #tpu.memory_space<vmem>>, %arg2: memref<2x16x8xf32, #tpu.memory_space<vmem>>, %arg3: memref<2x8xf32, #tpu.memory_space<vmem>>, %arg4: memref<17x8xf32, #tpu.memory_space<vmem>>, %arg5: memref<32x16xf32, #tpu.memory_space<vmem>>, %arg6: memref<1x1xf32, #tpu.memory_space<vmem>>) attributes {dimension_semantics = [], scalar_prefetch = 0 : i64, scratch_operands = 0 : i64, tpu.core_type = #tpu.core_type<tc>} {
    %c0 = arith.constant 0 : index
    %c0_0 = arith.constant 0 : index
    %c0_1 = arith.constant 0 : index
    %c0_2 = arith.constant 0 : index
    %0 = vector.load %arg0[%c0, %c0_0, %c0_1, %c0_2] : memref<3x2x1x1xf32, #tpu.memory_space<vmem>>, vector<1x2x1x1xf32>
    %1 = vector.shape_cast %0 : vector<1x2x1x1xf32> to vector<2x1x1xf32>
    %c1 = arith.constant 1 : index
    %c0_3 = arith.constant 0 : index
    %c0_4 = arith.constant 0 : index
    %c0_5 = arith.constant 0 : index
    %2 = vector.load %arg0[%c1, %c0_3, %c0_4, %c0_5] : memref<3x2x1x1xf32, #tpu.memory_space<vmem>>, vector<1x2x1x1xf32>
    %3 = vector.shape_cast %2 : vector<1x2x1x1xf32> to vector<2x1x1xf32>
    %c2 = arith.constant 2 : index
    %c0_6 = arith.constant 0 : index
    %c0_7 = arith.constant 0 : index
    %c0_8 = arith.constant 0 : index
    %4 = vector.load %arg0[%c2, %c0_6, %c0_7, %c0_8] : memref<3x2x1x1xf32, #tpu.memory_space<vmem>>, vector<1x2x1x1xf32>
    %5 = vector.shape_cast %4 : vector<1x2x1x1xf32> to vector<2x1x1xf32>
    %6 = math.sqrt %5 : vector<2x1x1xf32>
    %c0_9 = arith.constant 0 : index
    %c0_10 = arith.constant 0 : index
    %c0_11 = arith.constant 0 : index
    %7 = vector.load %arg1[%c0_9, %c0_10, %c0_11] : memref<2x16x8xf32, #tpu.memory_space<vmem>>, vector<2x16x8xf32>
    %8 = vector.broadcast %1 : vector<2x1x1xf32> to vector<2x16x8xf32>
    %9 = arith.mulf %8, %7 : vector<2x16x8xf32>
    %c0_12 = arith.constant 0 : index
    %c0_13 = arith.constant 0 : index
    %c0_14 = arith.constant 0 : index
    %10 = vector.load %arg2[%c0_12, %c0_13, %c0_14] : memref<2x16x8xf32, #tpu.memory_space<vmem>>, vector<2x16x8xf32>
    %11 = vector.broadcast %3 : vector<2x1x1xf32> to vector<2x16x8xf32>
    %12 = arith.mulf %11, %10 : vector<2x16x8xf32>
    %13 = arith.addf %9, %12 : vector<2x16x8xf32>
    %c0_15 = arith.constant 0 : index
    %c0_16 = arith.constant 0 : index
    %14 = vector.load %arg4[%c0_15, %c0_16] : memref<17x8xf32, #tpu.memory_space<vmem>>, vector<17x8xf32>
    %15 = vector.extract_strided_slice %14 {offsets = [0, 0], sizes = [8, 8], strides = [1, 1]} : vector<17x8xf32> to vector<8x8xf32>
    %16 = vector.extract_strided_slice %14 {offsets = [8, 0], sizes = [8, 8], strides = [1, 1]} : vector<17x8xf32> to vector<8x8xf32>
    %17 = vector.extract_strided_slice %14 {offsets = [16, 0], sizes = [1, 8], strides = [1, 1]} : vector<17x8xf32> to vector<1x8xf32>
    %18 = vector.shape_cast %13 : vector<2x16x8xf32> to vector<32x8xf32>
    %cst = arith.constant dense<0.000000e+00> : vector<32x8xf32>
    %19 = tpu.matmul %18, %15, %cst {dimension_numbers = #tpu.dot_dimension_numbers<[1], [0], [0], [1], [0, 0, 1, 1], [], []>} : vector<32x8xf32>, vector<8x8xf32>, vector<32x8xf32> -> vector<32x8xf32>
    %c0_17 = arith.constant 0 : index
    %c0_18 = arith.constant 0 : index
    %20 = vector.load %arg3[%c0_17, %c0_18] : memref<2x8xf32, #tpu.memory_space<vmem>>, vector<2x8xf32>
    %cst_19 = arith.constant dense<0.000000e+00> : vector<2x8xf32>
    %21 = tpu.matmul %20, %16, %cst_19 {dimension_numbers = #tpu.dot_dimension_numbers<[1], [0], [0], [1], [0, 0, 1, 1], [], []>} : vector<2x8xf32>, vector<8x8xf32>, vector<2x8xf32> -> vector<2x8xf32>
    %22 = vector.broadcast %17 : vector<1x8xf32> to vector<2x8xf32>
    %23 = arith.addf %21, %22 : vector<2x8xf32>
    %24 = vector.shape_cast %19 : vector<32x8xf32> to vector<2x16x8xf32>
    %25 = vector.shape_cast %23 : vector<2x8xf32> to vector<2x1x8xf32>
    %26 = vector.broadcast %25 : vector<2x1x8xf32> to vector<2x16x8xf32>
    %27 = arith.addf %24, %26 : vector<2x16x8xf32>
    %28 = arith.subf %27, %7 : vector<2x16x8xf32>
    %29 = vector.broadcast %6 : vector<2x1x1xf32> to vector<2x16x8xf32>
    %30 = arith.mulf %29, %28 : vector<2x16x8xf32>
    %31 = vector.shape_cast %30 : vector<2x16x8xf32> to vector<32x8xf32>
    %32 = arith.mulf %31, %31 : vector<32x8xf32>
    %33 = vector.shape_cast %32 : vector<32x8xf32> to vector<1x32x8xf32>
    %cst_20 = arith.constant dense<0.000000e+00> : vector<1xf32>
    %34 = vector.multi_reduction <add>, %33, %cst_20 [1, 2] : vector<1x32x8xf32> to vector<1xf32>
    %35 = vector.shape_cast %34 : vector<1xf32> to vector<1x1x1xf32>
    %36 = vector.extract %35[0, 0, 0] : f32 from vector<1x1x1xf32>
    %37 = vector.broadcast %36 : f32 to vector<1x1xf32>
    %38 = vector.extract_strided_slice %30 {offsets = [0, 0, 0], sizes = [1, 16, 8], strides = [1, 1, 1]} : vector<2x16x8xf32> to vector<1x16x8xf32>
    %39 = vector.shape_cast %38 : vector<1x16x8xf32> to vector<16x8xf32>
    %40 = vector.extract_strided_slice %30 {offsets = [1, 0, 0], sizes = [1, 16, 8], strides = [1, 1, 1]} : vector<2x16x8xf32> to vector<1x16x8xf32>
    %41 = vector.shape_cast %40 : vector<1x16x8xf32> to vector<16x8xf32>
    %42 = tpu.concatenate %39, %41 in 1 : vector<16x8xf32>, vector<16x8xf32> -> vector<16x16xf32>
    %c0_21 = arith.constant 0 : index
    %c0_22 = arith.constant 0 : index
    %43 = vector.load %arg5[%c0_21, %c0_22] : memref<32x16xf32, #tpu.memory_space<vmem>>, vector<32x16xf32>
    %cst_23 = arith.constant dense<0.000000e+00> : vector<32x16xf32>
    %44 = tpu.matmul %43, %42, %cst_23 {dimension_numbers = #tpu.dot_dimension_numbers<[1], [0], [0], [1], [0, 0, 1, 1], [], []>} : vector<32x16xf32>, vector<16x16xf32>, vector<32x16xf32> -> vector<32x16xf32>
    %45 = arith.mulf %44, %44 : vector<32x16xf32>
    %46 = vector.shape_cast %45 : vector<32x16xf32> to vector<1x32x16xf32>
    %cst_24 = arith.constant dense<0.000000e+00> : vector<1xf32>
    %47 = vector.multi_reduction <add>, %46, %cst_24 [1, 2] : vector<1x32x16xf32> to vector<1xf32>
    %48 = vector.shape_cast %47 : vector<1xf32> to vector<1x1x1xf32>
    %49 = vector.extract %48[0, 0, 0] : f32 from vector<1x1x1xf32>
    %50 = vector.broadcast %49 : f32 to vector<1x1xf32>
    %51 = arith.addf %37, %50 : vector<1x1xf32>
    %cst_25 = arith.constant 3.906250e-03 : f32
    %52 = vector.broadcast %cst_25 : f32 to vector<1x1xf32>
    %53 = arith.mulf %51, %52 : vector<1x1xf32>
    %c0_26 = arith.constant 0 : index
    %c0_27 = arith.constant 0 : index
    %54 = vector.load %arg6[%c0_26, %c0_27] : memref<1x1xf32, #tpu.memory_space<vmem>>, vector<1x1xf32>
    tpu.vector_store %arg6[%c0_26, %c0_27], %53 {strides = array<i32>} : memref<1x1xf32, #tpu.memory_space<vmem>>, vector<1x1xf32>,
    return
  }
}

</mosaic_0001>

<llo_original>
// kernel: diffusion_ts_loss.1
$region0: #{diffusion_ts_loss.1}
  #allocation0 [shape = 'u32[]', space=smem, size = 0x4, offset = 0x4, fixed_abs, tag = 'smem constant byte address 0x4 - core index']
  #allocation1 [shape = 'u32[144,128]{1,0:T(1,128)}', space=vmem, size = 0x12000, scoped, tag = 'internal scratch']
  %s0 = inlined_call_operand.vmem [shape: f32[3,2,1,1], index: 0, kind: input, shape index: {}]
  %s1 = inlined_call_operand.vmem [shape: f32[2,16,8], index: 1, kind: input, shape index: {}]
  %s2 = inlined_call_operand.vmem [shape: f32[2,16,8], index: 2, kind: input, shape index: {}]
  %s3 = inlined_call_operand.vmem [shape: f32[2,8], index: 3, kind: input, shape index: {}]
  %s4 = inlined_call_operand.vmem [shape: f32[17,8], index: 4, kind: input, shape index: {}]
  %s5 = inlined_call_operand.vmem [shape: f32[32,16], index: 5, kind: input, shape index: {}]
  %s6 = inlined_call_operand.hbm [shape: f32[1,1], index: 6, kind: output, shape index: {}]
  %s7 = sld [smem:[#allocation0]]
  $region34: #{diffusion_ts_loss.1} parent=0
    _
  %s9 = ssub.s32 1, %s7
  %s10 = scalar_select 0, %s9, %s7
  $region1: #{diffusion_ts_loss.1} parent=0
    #allocation2 [shape = 'u8[512]{0}', space=vmem, size = 0x400, scoped, tag = 'output window, operand 0, single buffered']
    #allocation3 [shape = 's32[1]{0}', space=sflag, size = 0x4, scoped, tag = 'scoped memory for diffusion_ts_loss.1']
    %11 = vsyncpa [#allocation3], 0
    // Predicated region
    $region2: #{diffusion_ts_loss.1} parent=1 // pred_check
      _
    $region3: #{diffusion_ts_loss.1} parent=1 // pred_check_branch
      %13 = sbr.rel (0) target = $region5
    $region4: #{diffusion_ts_loss.1} parent=1 // pred_region
      _
    $region5: #{diffusion_ts_loss.1} parent=1 // pred_fallthru
      _
    // Predicated region
    $region6: #{diffusion_ts_loss.1} parent=1 // pred_check
      _
    $region7: #{diffusion_ts_loss.1} parent=1 // pred_check_branch
      %15 = sbr.rel (0) target = $region9
    $region8: #{diffusion_ts_loss.1} parent=1 // pred_region
      _
    $region9: #{diffusion_ts_loss.1} parent=1 // pred_fallthru
      _
    // Predicated region
    $region10: #{diffusion_ts_loss.1} parent=1 // pred_check
      _
    $region11: #{diffusion_ts_loss.1} parent=1 // pred_check_branch
      %17 = sbr.rel (0) target = $region13
    $region12: #{diffusion_ts_loss.1} parent=1 // pred_region
      _
    $region13: #{diffusion_ts_loss.1} parent=1 // pred_fallthru
      _
    // Predicated region
    $region14: #{diffusion_ts_loss.1} parent=1 // pred_check
      _
    $region15: #{diffusion_ts_loss.1} parent=1 // pred_check_branch
      %19 = sbr.rel (0) target = $region17
    $region16: #{diffusion_ts_loss.1} parent=1 // pred_region
      _
    $region17: #{diffusion_ts_loss.1} parent=1 // pred_fallthru
      _
    // Predicated region
    $region18: #{diffusion_ts_loss.1} parent=1 // pred_check
      _
    $region19: #{diffusion_ts_loss.1} parent=1 // pred_check_branch
      %21 = sbr.rel (0) target = $region21
    $region20: #{diffusion_ts_loss.1} parent=1 // pred_region
      _
    $region21: #{diffusion_ts_loss.1} parent=1 // pred_fallthru
      _
    // Predicated region
    $region22: #{diffusion_ts_loss.1} parent=1 // pred_check
      _
    $region23: #{diffusion_ts_loss.1} parent=1 // pred_check_branch
      %23 = sbr.rel (0) target = $region25
    $region24: #{diffusion_ts_loss.1} parent=1 // pred_region
      _
    $region25: #{diffusion_ts_loss.1} parent=1 // pred_fallthru
      _
    %v24 = vld [vmem:[%s0] sm:$0x1]
    %v25 = vld [vmem:[%s0 + $0x1] sm:$0x1]
    %s26 = scalar_lea.vmem %s0, 2
    %v27 = vld [vmem:[%s26] sm:$0x1]
    %v28 = vld [vmem:[%s26 + $0x1] sm:$0x1]
    %s29 = scalar_lea.vmem %s0, 4
    %v30 = vld [vmem:[%s29] sm:$0x1]
    %v31 = vld [vmem:[%s29 + $0x1] sm:$0x1]
    %v32 = vrsqrt.pop %v30
    %v33 = vmul.f32 %v30, %v32
    %vm34 = vcmp.eq.f32.partialorder %v30, inf
    %v35 = vsel %vm34, %v30, %v33
    %vm36 = vcmp.eq.f32.partialorder %v30, 0.0
    %v37 = vand.u32 %v30, 2147483648
    %v38 = vsel %vm36, %v37, %v35
    %v39 = vrsqrt.pop %v31
    %v40 = vmul.f32 %v31, %v39
    %vm41 = vcmp.eq.f32.partialorder %v31, inf
    %v42 = vsel %vm41, %v31, %v40
    %vm43 = vcmp.eq.f32.partialorder %v31, 0.0
    %v44 = vand.u32 %v31, 2147483648
    %v45 = vsel %vm43, %v44, %v42
    %v46 = vld [vmem:[%s1] sm:$0xff]
    %v47 = vld [vmem:[%s1 + $0x8] sm:$0xff]
    %v48 = vld [vmem:[%s1 + $0x10] sm:$0xff]
    %v49 = vld [vmem:[%s1 + $0x18] sm:$0xff]
    %v52 = vlaneseq
    %v53 = vshrl.u32 %v52, 7
    %v54 = vsub.s32 0, %v53
    %v55 = vrot.slane %v24, %v54
    %v56 = vlaneseq
    %v57 = vshrl.u32 %v56, 7
    %v58 = vsub.s32 0, %v57
    %v59 = vrot.slane %v25, %v58
    %60 = vset.pattern.permute.xlu0 0
    %61 = vperm.xlu0 %60, %v55
    %v62 = vpop.permute.xlu0 %61
    %64 = vset.pattern.permute.xlu0 0
    %65 = vperm.xlu0 %64, %v59
    %v66 = vpop.permute.xlu0 %65
    %v68 = vmul.f32 %v62, %v46
    %v69 = vmul.f32 %v62, %v47
    %v70 = vmul.f32 %v66, %v48
    %v71 = vmul.f32 %v66, %v49
    %v72 = vld [vmem:[%s2] sm:$0xff]
    %v73 = vld [vmem:[%s2 + $0x8] sm:$0xff]
    %v74 = vld [vmem:[%s2 + $0x10] sm:$0xff]
    %v75 = vld [vmem:[%s2 + $0x18] sm:$0xff]
    %v78 = vlaneseq
    %v79 = vshrl.u32 %v78, 7
    %v80 = vsub.s32 0, %v79
    %v81 = vrot.slane %v27, %v80
    %v82 = vlaneseq
    %v83 = vshrl.u32 %v82, 7
    %v84 = vsub.s32 0, %v83
    %v85 = vrot.slane %v28, %v84
    %86 = vset.pattern.permute.xlu0 0
    %87 = vperm.xlu0 %86, %v81
    %v88 = vpop.permute.xlu0 %87
    %90 = vset.pattern.permute.xlu0 0
    %91 = vperm.xlu0 %90, %v85
    %v92 = vpop.permute.xlu0 %91
    %v94 = vmul.f32 %v88, %v72
    %v95 = vmul.f32 %v88, %v73
    %v96 = vmul.f32 %v92, %v74
    %v97 = vmul.f32 %v92, %v75
    %v98 = vadd.f32 %v68, %v94
    %v99 = vadd.f32 %v69, %v95
    %v100 = vadd.f32 %v70, %v96
    %v101 = vadd.f32 %v71, %v97
    %v102 = vld [vmem:[%s4] sm:$0xff]
    %v103 = vld [vmem:[%s4 + $0x8] sm:$0xff]
    %v104 = vld [vmem:[%s4 + $0x10] sm:$0x1]
    %vm105 = vcmask 64512
    %v107 = vsel %vm105, %v98, 0
    %v110 = vsel %vm105, %v99, 0
    %v113 = vsel %vm105, %v100, 0
    %v116 = vsel %vm105, %v101, 0
    %118 = vmatprep.subr.mxu0 0.0
    %119 = vmatpush1.msra.mxu0 0.0
    %120 = vmatprep.subr.mxu0 0.0
    %121 = vmatpush1.msra.mxu0 0.0
    %122 = vmatprep.subr.mxu0 0.0
    %123 = vmatpush1.msra.mxu0 0.0
    %124 = vmatprep.subr.mxu0 0.0
    %125 = vmatpush1.msra.mxu0 0.0
    %126 = vmatprep.subr.mxu0 0.0
    %127 = vmatpush1.msra.mxu0 0.0
    %128 = vmatprep.subr.mxu0 0.0
    %129 = vmatpush1.msra.mxu0 0.0
    %130 = vmatprep.subr.mxu0 0.0
    %131 = vmatpush1.msra.mxu0 0.0
    %132 = vmatprep.subr.mxu0 0.0
    %133 = vmatpush1.msra.mxu0 0.0
    %134 = vmatprep.subr.mxu0 0.0
    %135 = vmatpush1.msra.mxu0 0.0
    %136 = vmatprep.subr.mxu0 0.0
    %137 = vmatpush1.msra.mxu0 0.0
    %138 = vmatprep.subr.mxu0 0.0
    %139 = vmatpush1.msra.mxu0 0.0
    %140 = vmatprep.subr.mxu0 0.0
    %141 = vmatpush1.msra.mxu0 0.0
    %142 = vmatprep.subr.mxu0 0.0
    %143 = vmatpush1.msra.mxu0 0.0
    %144 = vmatprep.subr.mxu0 0.0
    %145 = vmatpush1.msra.mxu0 0.0
    %146 = vmatprep.subr.mxu0 0.0
    %147 = vmatpush1.msra.mxu0 0.0
    %148 = vmatprep.subr.mxu0 0.0
    %149 = vmatpush1.msra.mxu0 %v102
    %150 = vmatprep.subr.mxu0 0.0
    %151 = vmatpush2.msra.mxu0 0.0
    %152 = vmatprep.subr.mxu0 0.0
    %153 = vmatpush2.msra.mxu0 0.0
    %154 = vmatprep.subr.mxu0 0.0
    %155 = vmatpush2.msra.mxu0 0.0
    %156 = vmatprep.subr.mxu0 0.0
    %157 = vmatpush2.msra.mxu0 0.0
    %158 = vmatprep.subr.mxu0 0.0
    %159 = vmatpush2.msra.mxu0 0.0
    %160 = vmatprep.subr.mxu0 0.0
    %161 = vmatpush2.msra.mxu0 0.0
    %162 = vmatprep.subr.mxu0 0.0
    %163 = vmatpush2.msra.mxu0 0.0
    %164 = vmatprep.subr.mxu0 0.0
    %165 = vmatpush2.msra.mxu0 0.0
    %166 = vmatprep.subr.mxu0 0.0
    %167 = vmatpush2.msra.mxu0 0.0
    %168 = vmatprep.subr.mxu0 0.0
    %169 = vmatpush2.msra.mxu0 0.0
    %170 = vmatprep.subr.mxu0 0.0
    %171 = vmatpush2.msra.mxu0 0.0
    %172 = vmatprep.subr.mxu0 0.0
    %173 = vmatpush2.msra.mxu0 0.0
    %174 = vmatprep.subr.mxu0 0.0
    %175 = vmatpush2.msra.mxu0 0.0
    %176 = vmatprep.subr.mxu0 0.0
    %177 = vmatpush2.msra.mxu0 0.0
    %178 = vmatprep.subr.mxu0 0.0
    %179 = vmatpush2.msra.mxu0 0.0
    %180 = vmatprep.subr.mxu0 0.0
    %181 = vmatpush2.msra.mxu0 0.0
    %182 = vmatprep.mubr.f32.mxu0 0.0
    %183 = vmatmul.mubr.f32.gmra.mxu0 %v107
    %v184 = vpop.f32.mrf.mxu0
    %v185 = vadd.f32 0.0, %v184
    %v186 = vpop.f32.mrf.mxu0
    %187 = vmatprep.mubr.f32.mxu0 0.0
    %188 = vmatmul.mubr.f32.gmra.mxu0 %v110
    %v189 = vpop.f32.mrf.mxu0
    %v190 = vadd.f32 0.0, %v189
    %v191 = vpop.f32.mrf.mxu0
    %192 = vmatprep.mubr.f32.mxu0 0.0
    %193 = vmatmul.mubr.f32.gmra.mxu0 %v113
    %v194 = vpop.f32.mrf.mxu0
    %v195 = vadd.f32 0.0, %v194
    %v196 = vpop.f32.mrf.mxu0
    %197 = vmatprep.mubr.f32.mxu0 0.0
    %198 = vmatmul.mubr.f32.gmra.mxu0 %v116
    %v199 = vpop.f32.mrf.mxu0
    %v200 = vadd.f32 0.0, %v199
    %v201 = vpop.f32.mrf.mxu0
    %202 = vdwg.mxu0
    %v203 = vld [vmem:[%s3] sm:$0x3]
    %v204 = vlaneseq
    %v205 = vshrl.u32 %v204, 7
    %v206 = vsub.s32 0, %v205
    %v207 = vrot.slane %v104, %v206
    %v209 = vsel %vm105, %v203, 0
    %211 = vmatprep.subr.mxu0 0.0
    %212 = vmatpush1.msra.mxu0 0.0
    %213 = vmatprep.subr.mxu0 0.0
    %214 = vmatpush1.msra.mxu0 0.0
    %215 = vmatprep.subr.mxu0 0.0
    %216 = vmatpush1.msra.mxu0 0.0
    %217 = vmatprep.subr.mxu0 0.0
    %218 = vmatpush1.msra.mxu0 0.0
    %219 = vmatprep.subr.mxu0 0.0
    %220 = vmatpush1.msra.mxu0 0.0
    %221 = vmatprep.subr.mxu0 0.0
    %222 = vmatpush1.msra.mxu0 0.0
    %223 = vmatprep.subr.mxu0 0.0
    %224 = vmatpush1.msra.mxu0 0.0
    %225 = vmatprep.subr.mxu0 0.0
    %226 = vmatpush1.msra.mxu0 0.0
    %227 = vmatprep.subr.mxu0 0.0
    %228 = vmatpush1.msra.mxu0 0.0
    %229 = vmatprep.subr.mxu0 0.0
    %230 = vmatpush1.msra.mxu0 0.0
    %231 = vmatprep.subr.mxu0 0.0
    %232 = vmatpush1.msra.mxu0 0.0
    %233 = vmatprep.subr.mxu0 0.0
    %234 = vmatpush1.msra.mxu0 0.0
    %235 = vmatprep.subr.mxu0 0.0
    %236 = vmatpush1.msra.mxu0 0.0
    %237 = vmatprep.subr.mxu0 0.0
    %238 = vmatpush1.msra.mxu0 0.0
    %239 = vmatprep.subr.mxu0 0.0
    %240 = vmatpush1.msra.mxu0 0.0
    %241 = vmatprep.subr.mxu0 0.0
    %242 = vmatpush1.msra.mxu0 %v103
    %243 = vmatprep.subr.mxu0 0.0
    %244 = vmatpush2.msra.mxu0 0.0
    %245 = vmatprep.subr.mxu0 0.0
    %246 = vmatpush2.msra.mxu0 0.0
    %247 = vmatprep.subr.mxu0 0.0
    %248 = vmatpush2.msra.mxu0 0.0
    %249 = vmatprep.subr.mxu0 0.0
    %250 = vmatpush2.msra.mxu0 0.0
    %251 = vmatprep.subr.mxu0 0.0
    %252 = vmatpush2.msra.mxu0 0.0
    %253 = vmatprep.subr.mxu0 0.0
    %254 = vmatpush2.msra.mxu0 0.0
    %255 = vmatprep.subr.mxu0 0.0
    %256 = vmatpush2.msra.mxu0 0.0
    %257 = vmatprep.subr.mxu0 0.0
    %258 = vmatpush2.msra.mxu0 0.0
    %259 = vmatprep.subr.mxu0 0.0
    %260 = vmatpush2.msra.mxu0 0.0
    %261 = vmatprep.subr.mxu0 0.0
    %262 = vmatpush2.msra.mxu0 0.0
    %263 = vmatprep.subr.mxu0 0.0
    %264 = vmatpush2.msra.mxu0 0.0
    %265 = vmatprep.subr.mxu0 0.0
    %266 = vmatpush2.msra.mxu0 0.0
    %267 = vmatprep.subr.mxu0 0.0
    %268 = vmatpush2.msra.mxu0 0.0
    %269 = vmatprep.subr.mxu0 0.0
    %270 = vmatpush2.msra.mxu0 0.0
    %271 = vmatprep.subr.mxu0 0.0
    %272 = vmatpush2.msra.mxu0 0.0
    %273 = vmatprep.subr.mxu0 0.0
    %274 = vmatpush2.msra.mxu0 0.0
    %275 = vmatprep.mubr.f32.mxu0 0.0
    %276 = vmatmul.mubr.f32.gmra.mxu0 %v209
    %v277 = vpop.f32.mrf.mxu0
    %v278 = vadd.f32 %v207, %v277
    %v279 = vpop.f32.mrf.mxu0
    %280 = vdwg.mxu0
    %v283 = vunpack.c.l.s4 1966171168
    %v284 = vunpack.c.0.s8 %v283
    %v285 = vlaneseq
    %v286 = vshrl.u32 %v285, 7
    %v287 = vsub.s32 %v284, %v286
    %v288 = vrot.slane %v278, %v287
    %v289 = vcombine.high %v288, %v288
    %v291 = vunpack.c.l.s4 1966171168
    %v292 = vunpack.c.0.s8 %v291
    %v293 = vlaneseq
    %v294 = vshrl.u32 %v293, 7
    %v295 = vsub.s32 %v292, %v294
    %v296 = vrot.slane %v288, %v295
    %v298 = vunpack.c.l.s4 1966171168
    %v299 = vunpack.c.0.s8 %v298
    %v300 = vlaneseq
    %v301 = vshrl.u32 %v300, 7
    %v302 = vsub.s32 %v299, %v301
    %v303 = vrot.slane %v289, %v302
    %v304 = vlaneseq
    %v305 = vshrl.u32 %v304, 7
    %v306 = vsub.s32 0, %v305
    %v307 = vrot.slane %v296, %v306
    %v308 = vlaneseq
    %v309 = vshrl.u32 %v308, 7
    %v310 = vsub.s32 0, %v309
    %v311 = vrot.slane %v303, %v310
    %v314 = vadd.f32 %v185, %v307
    %v315 = vadd.f32 %v190, %v307
    %v316 = vadd.f32 %v195, %v311
    %v317 = vadd.f32 %v200, %v311
    %v318 = vsub.f32 %v314, %v46
    %v319 = vsub.f32 %v315, %v47
    %v320 = vsub.f32 %v316, %v48
    %v321 = vsub.f32 %v317, %v49
    %v324 = vlaneseq
    %v325 = vshrl.u32 %v324, 7
    %v326 = vsub.s32 0, %v325
    %v327 = vrot.slane %v38, %v326
    %v328 = vlaneseq
    %v329 = vshrl.u32 %v328, 7
    %v330 = vsub.s32 0, %v329
    %v331 = vrot.slane %v45, %v330
    %332 = vset.pattern.permute.xlu0 0
    %333 = vperm.xlu0 %332, %v327
    %v334 = vpop.permute.xlu0 %333
    %336 = vset.pattern.permute.xlu0 0
    %337 = vperm.xlu0 %336, %v331
    %v338 = vpop.permute.xlu0 %337
    %v340 = vmul.f32 %v334, %v318
    %v341 = vmul.f32 %v334, %v319
    %v342 = vmul.f32 %v338, %v320
    %v343 = vmul.f32 %v338, %v321
    %v344 = vmul.f32 %v340, %v340
    %v345 = vmul.f32 %v341, %v341
    %v346 = vmul.f32 %v342, %v342
    %v347 = vmul.f32 %v343, %v343
    %v348 = vsel %vm105, %v344, 0.0
    %v349 = vsel %vm105, %v345, 0.0
    %v350 = vadd.f32 %v348, %v349
    %v351 = vsel %vm105, %v346, 0.0
    %v352 = vadd.f32 %v350, %v351
    %v353 = vsel %vm105, %v347, 0.0
    %v354 = vadd.f32 %v352, %v353
    %355 = vadd.xlane.f32.xlu0 %v354
    %v356 = vpop.xlane.xlu0 %355
    %v357 = vrot.slane %v356, 4
    %v358 = vadd.f32 %v356, %v357
    %v359 = vrot.slane %v358, 2
    %v360 = vadd.f32 %v358, %v359
    %v361 = vrot.slane %v360, 1
    %v362 = vadd.f32 %v360, %v361
    %s363 = vtos %v362
    %v364 = vstv %s363
    %367 = vrot.lane.b32.xlu0 %v342, 8
    %v368 = vpop.permute.xlu0 %367
    %369 = vrot.lane.b32.xlu0 %v343, 8
    %v370 = vpop.permute.xlu0 %369
    %v373 = vsel %vm105, %v340, %v368
    %v374 = vsel %vm105, %v341, %v370
    %v375 = vld [vmem:[%s5] sm:$0xff]
    %v376 = vld [vmem:[%s5 + $0x8] sm:$0xff]
    %v377 = vld [vmem:[%s5 + $0x10] sm:$0xff]
    %v378 = vld [vmem:[%s5 + $0x18] sm:$0xff]
    %vm379 = vcmask 130048
    %v381 = vsel %vm379, %v375, 0
    %v384 = vsel %vm379, %v376, 0
    %v387 = vsel %vm379, %v377, 0
    %v390 = vsel %vm379, %v378, 0
    %392 = vmatprep.subr.mxu0 0.0
    %393 = vmatpush1.msra.mxu0 0.0
    %394 = vmatprep.subr.mxu0 0.0
    %395 = vmatpush1.msra.mxu0 0.0
    %396 = vmatprep.subr.mxu0 0.0
    %397 = vmatpush1.msra.mxu0 0.0
    %398 = vmatprep.subr.mxu0 0.0
    %399 = vmatpush1.msra.mxu0 0.0
    %400 = vmatprep.subr.mxu0 0.0
    %401 = vmatpush1.msra.mxu0 0.0
    %402 = vmatprep.subr.mxu0 0.0
    %403 = vmatpush1.msra.mxu0 0.0
    %404 = vmatprep.subr.mxu0 0.0
    %405 = vmatpush1.msra.mxu0 0.0
    %406 = vmatprep.subr.mxu0 0.0
    %407 = vmatpush1.msra.mxu0 0.0
    %408 = vmatprep.subr.mxu0 0.0
    %409 = vmatpush1.msra.mxu0 0.0
    %410 = vmatprep.subr.mxu0 0.0
    %411 = vmatpush1.msra.mxu0 0.0
    %412 = vmatprep.subr.mxu0 0.0
    %413 = vmatpush1.msra.mxu0 0.0
    %414 = vmatprep.subr.mxu0 0.0
    %415 = vmatpush1.msra.mxu0 0.0
    %416 = vmatprep.subr.mxu0 0.0
    %417 = vmatpush1.msra.mxu0 0.0
    %418 = vmatprep.subr.mxu0 0.0
    %419 = vmatpush1.msra.mxu0 0.0
    %420 = vmatprep.subr.mxu0 0.0
    %421 = vmatpush1.msra.mxu0 %v374
    %422 = vmatprep.subr.mxu0 0.0
    %423 = vmatpush1.msra.mxu0 %v373
    %424 = vmatprep.subr.mxu0 0.0
    %425 = vmatpush2.msra.mxu0 0.0
    %426 = vmatprep.subr.mxu0 0.0
    %427 = vmatpush2.msra.mxu0 0.0
    %428 = vmatprep.subr.mxu0 0.0
    %429 = vmatpush2.msra.mxu0 0.0
    %430 = vmatprep.subr.mxu0 0.0
    %431 = vmatpush2.msra.mxu0 0.0
    %432 = vmatprep.subr.mxu0 0.0
    %433 = vmatpush2.msra.mxu0 0.0
    %434 = vmatprep.subr.mxu0 0.0
    %435 = vmatpush2.msra.mxu0 0.0
    %436 = vmatprep.subr.mxu0 0.0
    %437 = vmatpush2.msra.mxu0 0.0
    %438 = vmatprep.subr.mxu0 0.0
    %439 = vmatpush2.msra.mxu0 0.0
    %440 = vmatprep.subr.mxu0 0.0
    %441 = vmatpush2.msra.mxu0 0.0
    %442 = vmatprep.subr.mxu0 0.0
    %443 = vmatpush2.msra.mxu0 0.0
    %444 = vmatprep.subr.mxu0 0.0
    %445 = vmatpush2.msra.mxu0 0.0
    %446 = vmatprep.subr.mxu0 0.0
    %447 = vmatpush2.msra.mxu0 0.0
    %448 = vmatprep.subr.mxu0 0.0
    %449 = vmatpush2.msra.mxu0 0.0
    %450 = vmatprep.subr.mxu0 0.0
    %451 = vmatpush2.msra.mxu0 0.0
    %452 = vmatprep.subr.mxu0 0.0
    %453 = vmatpush2.msra.mxu0 0.0
    %454 = vmatprep.subr.mxu0 0.0
    %455 = vmatpush2.msra.mxu0 0.0
    %456 = vmatprep.mubr.f32.mxu0 0.0
    %457 = vmatmul.mubr.f32.gmra.mxu0 %v381
    %v458 = vpop.f32.mrf.mxu0
    %v459 = vadd.f32 0.0, %v458
    %v460 = vpop.f32.mrf.mxu0
    %461 = vmatprep.mubr.f32.mxu0 0.0
    %462 = vmatmul.mubr.f32.gmra.mxu0 %v384
    %v463 = vpop.f32.mrf.mxu0
    %v464 = vadd.f32 0.0, %v463
    %v465 = vpop.f32.mrf.mxu0
    %466 = vmatprep.mubr.f32.mxu0 0.0
    %467 = vmatmul.mubr.f32.gmra.mxu0 %v387
    %v468 = vpop.f32.mrf.mxu0
    %v469 = vadd.f32 0.0, %v468
    %v470 = vpop.f32.mrf.mxu0
    %471 = vmatprep.mubr.f32.mxu0 0.0
    %472 = vmatmul.mubr.f32.gmra.mxu0 %v390
    %v473 = vpop.f32.mrf.mxu0
    %v474 = vadd.f32 0.0, %v473
    %v475 = vpop.f32.mrf.mxu0
    %476 = vdwg.mxu0
    %v477 = vmul.f32 %v459, %v459
    %v478 = vmul.f32 %v464, %v464
    %v479 = vmul.f32 %v469, %v469
    %v480 = vmul.f32 %v474, %v474
    %v481 = vsel %vm379, %v477, 0.0
    %v482 = vsel %vm379, %v478, 0.0
    %v483 = vadd.f32 %v481, %v482
    %v484 = vsel %vm379, %v479, 0.0
    %v485 = vadd.f32 %v483, %v484
    %v486 = vsel %vm379, %v480, 0.0
    %v487 = vadd.f32 %v485, %v486
    %488 = vadd.xlane.f32.xlu0 %v487
    %v489 = vpop.xlane.xlu0 %488
    %v490 = vrot.slane %v489, 4
    %v491 = vadd.f32 %v489, %v490
    %v492 = vrot.slane %v491, 2
    %v493 = vadd.f32 %v491, %v492
    %v494 = vrot.slane %v493, 1
    %v495 = vadd.f32 %v493, %v494
    %s496 = vtos %v495
    %v497 = vstv %s496
    %v498 = vadd.f32 %v364, %v497
    %v499 = vmul.f32 %v498, 0.00390625
    %vm500 = vcmask 0
    %501 = vst.msk [vmem:[#allocation2] sm:$0x1] %vm500, %v499
    // Predicated region
    $region26: #{diffusion_ts_loss.1} parent=1 // pred_check
      _
    $region27: #{diffusion_ts_loss.1} parent=1 // pred_check_branch
      %503 = sbr.rel (0) target = $region29
    $region28: #{diffusion_ts_loss.1} parent=1 // pred_region
      %s505 = ssub.s32 16, 16
      %506 = vsyncadd [#allocation3], %s505
      %s508 = sshll.u32 [#allocation2], 4
      %s509 = int_to_ptr.vmem [resolvable:$true] %s508
      %511 = dma.vmem_to_hbm [thread:$0]  %s509, 16, %s6, [#allocation3]
    $region29: #{diffusion_ts_loss.1} parent=1 // pred_fallthru
      _
    // Predicated region
    $region30: #{diffusion_ts_loss.1} parent=1 // pred_check
      _
    $region31: #{diffusion_ts_loss.1} parent=1 // pred_check_branch
      %513 = sbr.rel (0) target = $region33
    $region32: #{diffusion_ts_loss.1} parent=1 // pred_region
      %514 = dma.done [#allocation3], 16
    $region33: #{diffusion_ts_loss.1} parent=1 // pred_fallthru
      _
    %515 = vsyncpa [#allocation3], 1

</llo_original>
